<compile_context>
chip_gen: v6e
topology: v6e:2x2x1
jax: 0.10.0
libtpu: 0.0.40
codegen_flags: <defaults>
</compile_context>

<pallas_src>
import functools

import jax
import jax.numpy as jnp
from jax.experimental import pallas as pl
from jax.experimental.pallas import tpu as pltpu

KSIZE = 3   # module default kernel
GROUP = 2   # module default group (dim must be divisible by it)


# ------------------------------ Pallas kernel -------------------------------

def _strip_att_kernel(xp_ref, f_ref, chi_ref, rmat_ref, bmat_ref, o_ref,
                      *, n_taps, tap_lane_stride, pad_lanes, sc):
    """Fused strip attention for one (batch, row-tile) block.

    xp_ref   : (Rt, SpC)  reflection-padded rows, (strip, C) flattened on lanes
    f_ref    : (K,  SC)   tanh'd filter * lamb_l*(inside_all+1), lane-tiled over strip
    chi_ref  : (1,  SC)   (lamb_h + 1) per channel, lane-tiled
    rmat_ref : (SC, C)    strip-mean reduce matrix  (i%C==c)/S
    bmat_ref : (C,  SC)   channel->lane broadcast matrix scaled by lamb_l*inside_all
    o_ref    : (Rt, SC)
    """
    xp = xp_ref[...].astype(jnp.float32)
    f = f_ref[...].astype(jnp.float32)

    # Identity rows are the centre lanes of the padded block (no second HBM stream).
    idn = xp[:, pad_lanes:pad_lanes + sc]

    # Dilated taps = contiguous lane-offset slices + VPU MACs (static unrolled loop).
    # lamb_l*(inside_all+1) is already folded into f, so this IS the low-band term.
    acc = xp[:, 0:sc] * f[0:1, :]
    for t in range(1, n_taps):
        off = t * tap_lane_stride
        acc = acc + xp[:, off:off + sc] * f[t:t + 1, :]

    # Strip GAP, factored: per-channel mean (SC -> C) then broadcast back (C -> SC)
    # as two small MXU matmuls -- no dense (SC,SC) operator, stays lane-dense.
    mean_c = jnp.dot(idn, rmat_ref[...], preferred_element_type=jnp.float32)
    gap = jnp.dot(mean_c, bmat_ref[...], preferred_element_type=jnp.float32)

    o_ref[...] = (acc - gap + idn * chi_ref[...]).astype(o_ref.dtype)


# --------------------------------- wrapper ----------------------------------

def spatial_strip_att(x, params, *, kernel=KSIZE, dilation=1, group=GROUP,
                      horizontal=True, row_tile=256, stream_dtype=jnp.float32):
    """Forward of PyTorch `spatial_strip_att`.  x: (N, C, H, W) float32 -> same shape."""
    N, C, H, W = x.shape
    k, d = kernel, dilation
    pad = d * (k - 1) // 2
    assert C % group == 0

    # ---- filter generation: GAP -> 1x1 conv (no bias) -> tanh (plain JAX glue) ----
    ap = jnp.mean(x, axis=(2, 3))                                    # (N, C)
    filt_g = jnp.tanh(ap @ params['conv_w'].T).reshape(N, group, k)  # (N, G, k)
    filt_c = jnp.repeat(filt_g, C // group, axis=1)                  # (N, C, k): chan c -> group c//(C//G)
    filt_c = jnp.transpose(filt_c, (0, 2, 1))                        # (N, k, C)

    ia = params['inside_all'].reshape(C)
    ll = params['lamb_l'].reshape(C)
    lh = params['lamb_h'].reshape(C)

    # fold lamb_l*(inside_all+1) into the filter taps (per channel)
    filt_c = filt_c * (ll * (ia + 1.0))[None, None, :]

    # ---- layout plumbing: strip axis adjacent to C, flatten to lane-dense S*C ----
    if horizontal:                       # taps & GAP along W
        xr = jnp.transpose(x, (0, 2, 3, 1))                          # (N, H, W, C)
    else:                                # taps & GAP along H
        xr = jnp.transpose(x, (0, 3, 2, 1))                          # (N, W, H, C)
    _, R, S, _ = xr.shape
    assert pad < S, "reflection pad must be smaller than the strip length"
    SC, SpC = S * C, (S + 2 * pad) * C
    xp = jnp.pad(xr, ((0, 0), (0, 0), (pad, pad), (0, 0)), mode='reflect')

    # ---- row tiling: multiple-of-8 tiles, zero-pad the row axis to a full grid ----
    n_tiles = max(1, -(-R // row_tile))            # cdiv
    Rt = -(-R // n_tiles)
    Rt = -(-Rt // 8) * 8
    Rp = n_tiles * Rt
    if Rp != R:
        xp = jnp.pad(xp, ((0, 0), (0, Rp - R), (0, 0), (0, 0)))
    xp_flat = xp.reshape(N, Rp, SpC).astype(stream_dtype)

    # lane-tiled per-channel filter (lane j = s*C + c  ->  channel j % C)
    filt = jnp.tile(filt_c, (1, 1, S)).astype(stream_dtype)          # (N, k, S*C)

    # per-channel high-band coefficient, lane-tiled
    chi = jnp.tile((lh + 1.0)[None, :], (1, S))                      # (1, S*C)

    # factored GAP operators: reduce (SC,C) with 1/S, broadcast (C,SC) * lamb_l*inside_all
    lane = jnp.arange(SC)
    chan = jnp.arange(C)
    rmat = (lane[:, None] % C == chan[None, :]).astype(jnp.float32) / S      # (SC, C)
    bmat = ((chan[:, None] == lane[None, :] % C).astype(jnp.float32)
            * (ll * ia)[:, None])                                            # (C, SC)

    grid = (N, n_tiles)

    itemsize = jnp.dtype(stream_dtype).itemsize
    block_bytes = (Rt * SpC * itemsize + Rt * SC * 4 + k * SC * itemsize
                   + SC * 4 + 2 * SC * C * 4)
    vmem_limit = int(min(64 * 2 ** 20, max(16 * 2 ** 20, 3 * block_bytes)))

    flops = int(N * Rp * (2 * k * SC + 4 * SC * C + 2 * SC))
    bytes_accessed = int(N * Rp * SpC * itemsize + N * Rp * SC * 4
                         + N * k * SC * itemsize + SC * 4 + 2 * SC * C * 4)

    out_flat = pl.pallas_call(
        functools.partial(_strip_att_kernel,
                          n_taps=k, tap_lane_stride=d * C,
                          pad_lanes=pad * C, sc=SC),
        out_shape=jax.ShapeDtypeStruct((N, Rp, SC), jnp.float32),
        grid_spec=pltpu.PrefetchScalarGridSpec(
            num_scalar_prefetch=0,
            grid=grid,
            in_specs=[
                pl.BlockSpec((None, Rt, SpC), lambda n, r: (n, r, 0)),   # padded rows
                pl.BlockSpec((None, k, SC), lambda n, r: (n, 0, 0)),     # per-batch filter
                pl.BlockSpec((1, SC), lambda n, r: (0, 0)),              # (lamb_h+1)
                pl.BlockSpec((SC, C), lambda n, r: (0, 0)),              # GAP reduce
                pl.BlockSpec((C, SC), lambda n, r: (0, 0)),              # GAP broadcast
            ],
            out_specs=pl.BlockSpec((None, Rt, SC), lambda n, r: (n, r, 0))),
        compiler_params=pltpu.CompilerParams(
            dimension_semantics=("parallel", "parallel"),
            vmem_limit_bytes=vmem_limit),
        cost_estimate=pl.CostEstimate(flops=flops, transcendentals=0,
                                      bytes_accessed=bytes_accessed),
    )(xp_flat, filt, chi, rmat, bmat)

    out = out_flat[:, :R, :].reshape(N, R, S, C)
    if horizontal:
        return jnp.transpose(out, (0, 3, 1, 2))                      # back to NCHW
    return jnp.transpose(out, (0, 3, 2, 1))


# --------------------------- pure-JAX reference ------------------------------

def spatial_strip_att_reference(x, params, *, kernel=KSIZE, dilation=1,
                                group=GROUP, horizontal=True):
    N, C, H, W = x.shape
    k, d = kernel, dilation
    pad = d * (k - 1) // 2
    ap = jnp.mean(x, axis=(2, 3))
    f = jnp.tanh(ap @ params['conv_w'].T).reshape(N, group, k)
    f = jnp.repeat(f, C // group, axis=1)                            # (N, C, k)
    if horizontal:
        xp = jnp.pad(x, ((0, 0), (0, 0), (0, 0), (pad, pad)), mode='reflect')
        out = sum(xp[:, :, :, t * d:t * d + W] * f[:, :, t][:, :, None, None]
                  for t in range(k))
        gap = jnp.mean(x, axis=3, keepdims=True)
    else:
        xp = jnp.pad(x, ((0, 0), (0, 0), (pad, pad), (0, 0)), mode='reflect')
        out = sum(xp[:, :, t * d:t * d + H, :] * f[:, :, t][:, :, None, None]
                  for t in range(k))
        gap = jnp.mean(x, axis=2, keepdims=True)
    ia = params['inside_all'].reshape(1, C, 1, 1)
    ll = params['lamb_l'].reshape(1, C, 1, 1)
    lh = params['lamb_h'].reshape(1, C, 1, 1)
    return (out * (ia + 1.0) - ia * gap) * ll + x * (lh + 1.0)


# ------------------------- deterministic parameters --------------------------

def init_params(key, dim, group=GROUP, kernel=KSIZE):
    k1, k2, k3, k4 = jax.random.split(key, 4)
    nrm = lambda kk, shape: 0.1 * jax.random.normal(kk, shape, jnp.float32)
    return dict(conv_w=nrm(k1, (group * kernel, dim)),   # Conv2d(dim, group*kernel, 1, bias=False)
                inside_all=nrm(k2, (dim, 1, 1)),
                lamb_l=nrm(k3, (dim,)),
                lamb_h=nrm(k4, (dim,)))


# ----------------------------------- main ------------------------------------

if __name__ == "__main__":
    key = jax.random.PRNGKey(0)
    k_x, k_p = jax.random.split(key)

    N, C, H, W = 2, 4, 16, 16            # dim=4, group=2, kernel=3, dilation=1
    x = jax.random.normal(k_x, (N, C, H, W), jnp.float32)
    params = init_params(k_p, C)

    @jax.jit
    def fwd(inp):
        return (spatial_strip_att(inp, params, horizontal=True),
                spatial_strip_att(inp, params, horizontal=False))

    out_h, out_v = jax.block_until_ready(fwd(x))

    ref_h = spatial_strip_att_reference(x, params, horizontal=True)
    ref_v = spatial_strip_att_reference(x, params, horizontal=False)

    assert out_h.shape == (N, C, H, W) and out_v.shape == (N, C, H, W)
    assert bool(jnp.all(jnp.isfinite(out_h))) and bool(jnp.all(jnp.isfinite(out_v)))
    assert bool(jnp.allclose(out_h, ref_h, rtol=1e-3, atol=1e-3)), \
        float(jnp.max(jnp.abs(out_h - ref_h)))
    assert bool(jnp.allclose(out_v, ref_v, rtol=1e-3, atol=1e-3)), \
        float(jnp.max(jnp.abs(out_v - ref_v)))
    print("KERNEL_OK")
</pallas_src>

<mosaic_0001>
module attributes {stable_mosaic.version = 11 : i64} {
  func.func @_strip_att_kernel(%arg0: i32, %arg1: i32, %arg2: memref<1x16x72xf32, #tpu.memory_space<vmem>>, %arg3: memref<1x3x64xf32, #tpu.memory_space<vmem>>, %arg4: memref<1x64xf32, #tpu.memory_space<vmem>>, %arg5: memref<64x4xf32, #tpu.memory_space<vmem>>, %arg6: memref<4x64xf32, #tpu.memory_space<vmem>>, %arg7: memref<1x16x64xf32, #tpu.memory_space<vmem>>) attributes {dimension_semantics = [#tpu.dimension_semantics<parallel>, #tpu.dimension_semantics<parallel>], iteration_bounds = array<i64: 2, 1>, scalar_prefetch = 0 : i64, scratch_operands = 0 : i64, tpu.core_type = #tpu.core_type<tc>, window_params = [{transform_indices = @transform_0, window_bounds = array<i64: 1, 16, 72>}, {transform_indices = @transform_1, window_bounds = array<i64: 1, 3, 64>}, {pipeline_mode = #tpu.pipeline_mode<synchronous>, transform_indices = @transform_2, window_bounds = array<i64: 1, 64>}, {pipeline_mode = #tpu.pipeline_mode<synchronous>, transform_indices = @transform_3, window_bounds = array<i64: 64, 4>}, {pipeline_mode = #tpu.pipeline_mode<synchronous>, transform_indices = @transform_4, window_bounds = array<i64: 4, 64>}, {transform_indices = @transform_5, window_bounds = array<i64: 1, 16, 64>}]} {
    %c0 = arith.constant 0 : index
    %c0_0 = arith.constant 0 : index
    %c0_1 = arith.constant 0 : index
    %0 = vector.load %arg2[%c0, %c0_0, %c0_1] : memref<1x16x72xf32, #tpu.memory_space<vmem>>, vector<1x16x72xf32>
    %1 = vector.shape_cast %0 : vector<1x16x72xf32> to vector<16x72xf32>
    %c0_2 = arith.constant 0 : index
    %c0_3 = arith.constant 0 : index
    %c0_4 = arith.constant 0 : index
    %2 = vector.load %arg3[%c0_2, %c0_3, %c0_4] : memref<1x3x64xf32, #tpu.memory_space<vmem>>, vector<1x3x64xf32>
    %3 = vector.shape_cast %2 : vector<1x3x64xf32> to vector<3x64xf32>
    %4 = vector.extract_strided_slice %1 {offsets = [0, 4], sizes = [16, 64], strides = [1, 1]} : vector<16x72xf32> to vector<16x64xf32>
    %5 = vector.extract_strided_slice %1 {offsets = [0, 0], sizes = [16, 64], strides = [1, 1]} : vector<16x72xf32> to vector<16x64xf32>
    %6 = vector.extract_strided_slice %3 {offsets = [0, 0], sizes = [1, 64], strides = [1, 1]} : vector<3x64xf32> to vector<1x64xf32>
    %7 = vector.broadcast %6 : vector<1x64xf32> to vector<16x64xf32>
    %8 = arith.mulf %5, %7 : vector<16x64xf32>
    %9 = vector.extract_strided_slice %1 {offsets = [0, 4], sizes = [16, 64], strides = [1, 1]} : vector<16x72xf32> to vector<16x64xf32>
    %10 = vector.extract_strided_slice %3 {offsets = [1, 0], sizes = [1, 64], strides = [1, 1]} : vector<3x64xf32> to vector<1x64xf32>
    %11 = vector.broadcast %10 : vector<1x64xf32> to vector<16x64xf32>
    %12 = arith.mulf %9, %11 : vector<16x64xf32>
    %13 = arith.addf %8, %12 : vector<16x64xf32>
    %14 = vector.extract_strided_slice %1 {offsets = [0, 8], sizes = [16, 64], strides = [1, 1]} : vector<16x72xf32> to vector<16x64xf32>
    %15 = vector.extract_strided_slice %3 {offsets = [2, 0], sizes = [1, 64], strides = [1, 1]} : vector<3x64xf32> to vector<1x64xf32>
    %16 = vector.broadcast %15 : vector<1x64xf32> to vector<16x64xf32>
    %17 = arith.mulf %14, %16 : vector<16x64xf32>
    %18 = arith.addf %13, %17 : vector<16x64xf32>
    %c0_5 = arith.constant 0 : index
    %c0_6 = arith.constant 0 : index
    %19 = vector.load %arg5[%c0_5, %c0_6] : memref<64x4xf32, #tpu.memory_space<vmem>>, vector<64x4xf32>
    %cst = arith.constant dense<0.000000e+00> : vector<16x4xf32>
    %20 = tpu.matmul %4, %19, %cst {dimension_numbers = #tpu.dot_dimension_numbers<[1], [0], [0], [1], [0, 0, 1, 1], [], []>} : vector<16x64xf32>, vector<64x4xf32>, vector<16x4xf32> -> vector<16x4xf32>
    %c0_7 = arith.constant 0 : index
    %c0_8 = arith.constant 0 : index
    %21 = vector.load %arg6[%c0_7, %c0_8] : memref<4x64xf32, #tpu.memory_space<vmem>>, vector<4x64xf32>
    %cst_9 = arith.constant dense<0.000000e+00> : vector<16x64xf32>
    %22 = tpu.matmul %20, %21, %cst_9 {dimension_numbers = #tpu.dot_dimension_numbers<[1], [0], [0], [1], [0, 0, 1, 1], [], []>} : vector<16x4xf32>, vector<4x64xf32>, vector<16x64xf32> -> vector<16x64xf32>
    %23 = arith.subf %18, %22 : vector<16x64xf32>
    %c0_10 = arith.constant 0 : index
    %c0_11 = arith.constant 0 : index
    %24 = vector.load %arg4[%c0_10, %c0_11] : memref<1x64xf32, #tpu.memory_space<vmem>>, vector<1x64xf32>
    %25 = vector.broadcast %24 : vector<1x64xf32> to vector<16x64xf32>
    %26 = arith.mulf %4, %25 : vector<16x64xf32>
    %27 = arith.addf %23, %26 : vector<16x64xf32>
    %c0_12 = arith.constant 0 : index
    %c0_13 = arith.constant 0 : index
    %c0_14 = arith.constant 0 : index
    %28 = vector.load %arg7[%c0_12, %c0_13, %c0_14] : memref<1x16x64xf32, #tpu.memory_space<vmem>>, vector<1x16x64xf32>
    %29 = vector.shape_cast %28 : vector<1x16x64xf32> to vector<16x64xf32>
    %30 = vector.shape_cast %27 : vector<16x64xf32> to vector<1x16x64xf32>
    tpu.vector_store %arg7[%c0_12, %c0_13, %c0_14], %30 {strides = array<i32>} : memref<1x16x64xf32, #tpu.memory_space<vmem>>, vector<1x16x64xf32>,
    return
  }
  func.func @transform_0(%arg0: i32, %arg1: i32) -> (i32, i32, i32) {
    %c0_i32 = arith.constant 0 : i32
    %c0_i32_0 = arith.constant 0 : i32
    return %arg0, %arg1, %c0_i32 : i32, i32, i32
  }
  func.func @transform_1(%arg0: i32, %arg1: i32) -> (i32, i32, i32) {
    %c0_i32 = arith.constant 0 : i32
    %c0_i32_0 = arith.constant 0 : i32
    %c0_i32_1 = arith.constant 0 : i32
    return %arg0, %c0_i32, %c0_i32_0 : i32, i32, i32
  }
  func.func @transform_2(%arg0: i32, %arg1: i32) -> (i32, i32) {
    %c0_i32 = arith.constant 0 : i32
    %c0_i32_0 = arith.constant 0 : i32
    %c0_i32_1 = arith.constant 0 : i32
    return %c0_i32, %c0_i32_0 : i32, i32
  }
  func.func @transform_3(%arg0: i32, %arg1: i32) -> (i32, i32) {
    %c0_i32 = arith.constant 0 : i32
    %c0_i32_0 = arith.constant 0 : i32
    %c0_i32_1 = arith.constant 0 : i32
    return %c0_i32, %c0_i32_0 : i32, i32
  }
  func.func @transform_4(%arg0: i32, %arg1: i32) -> (i32, i32) {
    %c0_i32 = arith.constant 0 : i32
    %c0_i32_0 = arith.constant 0 : i32
    %c0_i32_1 = arith.constant 0 : i32
    return %c0_i32, %c0_i32_0 : i32, i32
  }
  func.func @transform_5(%arg0: i32, %arg1: i32) -> (i32, i32, i32) {
    %c0_i32 = arith.constant 0 : i32
    %c0_i32_0 = arith.constant 0 : i32
    return %arg0, %arg1, %c0_i32 : i32, i32, i32
  }
}

</mosaic_0001>

<llo_original>
// kernel: tile.22
$region0: #{tile.22}
  %s0 = inlined_call_operand.vmem [shape: f32[2,3,16,4], index: 0, kind: input, shape index: {}]
  %s1 = inlined_call_operand.vmem [shape: f32[2,3,64], index: 1, kind: output, shape index: {}]
  $region1: #{tile.22} parent=0
    #allocation0 [shape = 'u8[12288]{0}', space=vmem, size = 0x3000, scoped, tag = 'scoped mem for output reshape']
    %s2 = smov 3
    %v3 = vld [vmem:[%s0] ss:$16 sm:%s2]
    %s4 = smov 12
    %v5 = vld [vmem:[%s0] ss:$16 sm:%s4]
    %vm6 = vcmask 1043458
    %v7 = vsel %vm6, %v5, %v3
    %s8 = smov 48
    %v9 = vld [vmem:[%s0] ss:$16 sm:%s8]
    %vm10 = vcmask 1045508
    %v11 = vsel %vm10, %v9, %v7
    %vm12 = vcmask 31744
    %13 = vst.msk [vmem:[#allocation0] sm:$0x3] %vm12, %v11
    %s14 = scalar_lea.vmem [#allocation0], 6
    %15 = vst.msk [vmem:[%s14] sm:$0xc] %vm12, %v11
    %s16 = scalar_lea.vmem [#allocation0], 12
    %17 = vst.msk [vmem:[%s16] sm:$0x30] %vm12, %v11
    %s18 = scalar_lea.vmem %s0, 15
    %s19 = smov 3
    %v20 = vld [vmem:[%s18] ss:$16 sm:%s19]
    %s21 = scalar_lea.vmem %s0, 15
    %s22 = smov 12
    %v23 = vld [vmem:[%s21] ss:$16 sm:%s22]
    %vm24 = vcmask 1043458
    %v25 = vsel %vm24, %v23, %v20
    %s26 = scalar_lea.vmem %s0, 15
    %s27 = smov 48
    %v28 = vld [vmem:[%s26] ss:$16 sm:%s27]
    %vm29 = vcmask 1045508
    %v30 = vsel %vm29, %v28, %v25
    %31 = vrot.lane.b32.xlu0 %v30, 60
    %v32 = vpop.permute.xlu0 %31
    %vm33 = vcmask 523744
    %34 = vst.msk [vmem:[#allocation0] sm:$0x3] %vm33, %v32
    %s35 = scalar_lea.vmem [#allocation0], 6
    %36 = vst.msk [vmem:[%s35] sm:$0xc] %vm33, %v32
    %s37 = scalar_lea.vmem [#allocation0], 12
    %38 = vst.msk [vmem:[%s37] sm:$0x30] %vm33, %v32
    %s39 = scalar_lea.vmem %s0, 14
    %s40 = smov 3
    %v41 = vld [vmem:[%s39] ss:$16 sm:%s40]
    %s42 = scalar_lea.vmem %s0, 14
    %s43 = smov 12
    %v44 = vld [vmem:[%s42] ss:$16 sm:%s43]
    %vm45 = vcmask 1043458
    %v46 = vsel %vm45, %v44, %v41
    %s47 = scalar_lea.vmem %s0, 14
    %s48 = smov 48
    %v49 = vld [vmem:[%s47] ss:$16 sm:%s48]
    %vm50 = vcmask 1045508
    %v51 = vsel %vm50, %v49, %v46
    %52 = vrot.lane.b32.xlu0 %v51, 56
    %v53 = vpop.permute.xlu0 %52
    %vm54 = vcmask 490944
    %55 = vst.msk [vmem:[#allocation0] sm:$0x3] %vm54, %v53
    %s56 = scalar_lea.vmem [#allocation0], 6
    %57 = vst.msk [vmem:[%s56] sm:$0xc] %vm54, %v53
    %s58 = scalar_lea.vmem [#allocation0], 12
    %59 = vst.msk [vmem:[%s58] sm:$0x30] %vm54, %v53
    %s60 = scalar_lea.vmem %s0, 13
    %s61 = smov 3
    %v62 = vld [vmem:[%s60] ss:$16 sm:%s61]
    %s63 = scalar_lea.vmem %s0, 13
    %s64 = smov 12
    %v65 = vld [vmem:[%s63] ss:$16 sm:%s64]
    %vm66 = vcmask 1043458
    %v67 = vsel %vm66, %v65, %v62
    %s68 = scalar_lea.vmem %s0, 13
    %s69 = smov 48
    %v70 = vld [vmem:[%s68] ss:$16 sm:%s69]
    %vm71 = vcmask 1045508
    %v72 = vsel %vm71, %v70, %v67
    %73 = vrot.lane.b32.xlu0 %v72, 52
    %v74 = vpop.permute.xlu0 %73
    %vm75 = vcmask 458144
    %76 = vst.msk [vmem:[#allocation0] sm:$0x3] %vm75, %v74
    %s77 = scalar_lea.vmem [#allocation0], 6
    %78 = vst.msk [vmem:[%s77] sm:$0xc] %vm75, %v74
    %s79 = scalar_lea.vmem [#allocation0], 12
    %80 = vst.msk [vmem:[%s79] sm:$0x30] %vm75, %v74
    %s81 = scalar_lea.vmem %s0, 12
    %s82 = smov 3
    %v83 = vld [vmem:[%s81] ss:$16 sm:%s82]
    %s84 = scalar_lea.vmem %s0, 12
    %s85 = smov 12
    %v86 = vld [vmem:[%s84] ss:$16 sm:%s85]
    %vm87 = vcmask 1043458
    %v88 = vsel %vm87, %v86, %v83
    %s89 = scalar_lea.vmem %s0, 12
    %s90 = smov 48
    %v91 = vld [vmem:[%s89] ss:$16 sm:%s90]
    %vm92 = vcmask 1045508
    %v93 = vsel %vm92, %v91, %v88
    %94 = vrot.lane.b32.xlu0 %v93, 48
    %v95 = vpop.permute.xlu0 %94
    %vm96 = vcmask 425344
    %97 = vst.msk [vmem:[#allocation0] sm:$0x3] %vm96, %v95
    %s98 = scalar_lea.vmem [#allocation0], 6
    %99 = vst.msk [vmem:[%s98] sm:$0xc] %vm96, %v95
    %s100 = scalar_lea.vmem [#allocation0], 12
    %101 = vst.msk [vmem:[%s100] sm:$0x30] %vm96, %v95
    %s102 = scalar_lea.vmem %s0, 11
    %s103 = smov 3
    %v104 = vld [vmem:[%s102] ss:$16 sm:%s103]
    %s105 = scalar_lea.vmem %s0, 11
    %s106 = smov 12
    %v107 = vld [vmem:[%s105] ss:$16 sm:%s106]
    %vm108 = vcmask 1043458
    %v109 = vsel %vm108, %v107, %v104
    %s110 = scalar_lea.vmem %s0, 11
    %s111 = smov 48
    %v112 = vld [vmem:[%s110] ss:$16 sm:%s111]
    %vm113 = vcmask 1045508
    %v114 = vsel %vm113, %v112, %v109
    %115 = vrot.lane.b32.xlu0 %v114, 44
    %v116 = vpop.permute.xlu0 %115
    %vm117 = vcmask 392544
    %118 = vst.msk [vmem:[#allocation0] sm:$0x3] %vm117, %v116
    %s119 = scalar_lea.vmem [#allocation0], 6
    %120 = vst.msk [vmem:[%s119] sm:$0xc] %vm117, %v116
    %s121 = scalar_lea.vmem [#allocation0], 12
    %122 = vst.msk [vmem:[%s121] sm:$0x30] %vm117, %v116
    %s123 = scalar_lea.vmem %s0, 10
    %s124 = smov 3
    %v125 = vld [vmem:[%s123] ss:$16 sm:%s124]
    %s126 = scalar_lea.vmem %s0, 10
    %s127 = smov 12
    %v128 = vld [vmem:[%s126] ss:$16 sm:%s127]
    %vm129 = vcmask 1043458
    %v130 = vsel %vm129, %v128, %v125
    %s131 = scalar_lea.vmem %s0, 10
    %s132 = smov 48
    %v133 = vld [vmem:[%s131] ss:$16 sm:%s132]
    %vm134 = vcmask 1045508
    %v135 = vsel %vm134, %v133, %v130
    %136 = vrot.lane.b32.xlu0 %v135, 40
    %v137 = vpop.permute.xlu0 %136
    %vm138 = vcmask 359744
    %139 = vst.msk [vmem:[#allocation0] sm:$0x3] %vm138, %v137
    %s140 = scalar_lea.vmem [#allocation0], 6
    %141 = vst.msk [vmem:[%s140] sm:$0xc] %vm138, %v137
    %s142 = scalar_lea.vmem [#allocation0], 12
    %143 = vst.msk [vmem:[%s142] sm:$0x30] %vm138, %v137
    %s144 = scalar_lea.vmem %s0, 9
    %s145 = smov 3
    %v146 = vld [vmem:[%s144] ss:$16 sm:%s145]
    %s147 = scalar_lea.vmem %s0, 9
    %s148 = smov 12
    %v149 = vld [vmem:[%s147] ss:$16 sm:%s148]
    %vm150 = vcmask 1043458
    %v151 = vsel %vm150, %v149, %v146
    %s152 = scalar_lea.vmem %s0, 9
    %s153 = smov 48
    %v154 = vld [vmem:[%s152] ss:$16 sm:%s153]
    %vm155 = vcmask 1045508
    %v156 = vsel %vm155, %v154, %v151
    %157 = vrot.lane.b32.xlu0 %v156, 36
    %v158 = vpop.permute.xlu0 %157
    %vm159 = vcmask 326944
    %160 = vst.msk [vmem:[#allocation0] sm:$0x3] %vm159, %v158
    %s161 = scalar_lea.vmem [#allocation0], 6
    %162 = vst.msk [vmem:[%s161] sm:$0xc] %vm159, %v158
    %s163 = scalar_lea.vmem [#allocation0], 12
    %164 = vst.msk [vmem:[%s163] sm:$0x30] %vm159, %v158
    %s165 = scalar_lea.vmem %s0, 8
    %s166 = smov 3
    %v167 = vld [vmem:[%s165] ss:$16 sm:%s166]
    %s168 = scalar_lea.vmem %s0, 8
    %s169 = smov 12
    %v170 = vld [vmem:[%s168] ss:$16 sm:%s169]
    %vm171 = vcmask 1043458
    %v172 = vsel %vm171, %v170, %v167
    %s173 = scalar_lea.vmem %s0, 8
    %s174 = smov 48
    %v175 = vld [vmem:[%s173] ss:$16 sm:%s174]
    %vm176 = vcmask 1045508
    %v177 = vsel %vm176, %v175, %v172
    %178 = vrot.lane.b32.xlu0 %v177, 32
    %v179 = vpop.permute.xlu0 %178
    %vm180 = vcmask 294144
    %181 = vst.msk [vmem:[#allocation0] sm:$0x3] %vm180, %v179
    %s182 = scalar_lea.vmem [#allocation0], 6
    %183 = vst.msk [vmem:[%s182] sm:$0xc] %vm180, %v179
    %s184 = scalar_lea.vmem [#allocation0], 12
    %185 = vst.msk [vmem:[%s184] sm:$0x30] %vm180, %v179
    %s186 = scalar_lea.vmem %s0, 7
    %s187 = smov 3
    %v188 = vld [vmem:[%s186] ss:$16 sm:%s187]
    %s189 = scalar_lea.vmem %s0, 7
    %s190 = smov 12
    %v191 = vld [vmem:[%s189] ss:$16 sm:%s190]
    %vm192 = vcmask 1043458
    %v193 = vsel %vm192, %v191, %v188
    %s194 = scalar_lea.vmem %s0, 7
    %s195 = smov 48
    %v196 = vld [vmem:[%s194] ss:$16 sm:%s195]
    %vm197 = vcmask 1045508
    %v198 = vsel %vm197, %v196, %v193
    %199 = vrot.lane.b32.xlu0 %v198, 28
    %v200 = vpop.permute.xlu0 %199
    %vm201 = vcmask 261344
    %202 = vst.msk [vmem:[#allocation0] sm:$0x3] %vm201, %v200
    %s203 = scalar_lea.vmem [#allocation0], 6
    %204 = vst.msk [vmem:[%s203] sm:$0xc] %vm201, %v200
    %s205 = scalar_lea.vmem [#allocation0], 12
    %206 = vst.msk [vmem:[%s205] sm:$0x30] %vm201, %v200
    %s207 = scalar_lea.vmem %s0, 6
    %s208 = smov 3
    %v209 = vld [vmem:[%s207] ss:$16 sm:%s208]
    %s210 = scalar_lea.vmem %s0, 6
    %s211 = smov 12
    %v212 = vld [vmem:[%s210] ss:$16 sm:%s211]
    %vm213 = vcmask 1043458
    %v214 = vsel %vm213, %v212, %v209
    %s215 = scalar_lea.vmem %s0, 6
    %s216 = smov 48
    %v217 = vld [vmem:[%s215] ss:$16 sm:%s216]
    %vm218 = vcmask 1045508
    %v219 = vsel %vm218, %v217, %v214
    %220 = vrot.lane.b32.xlu0 %v219, 24
    %v221 = vpop.permute.xlu0 %220
    %vm222 = vcmask 228544
    %223 = vst.msk [vmem:[#allocation0] sm:$0x3] %vm222, %v221
    %s224 = scalar_lea.vmem [#allocation0], 6
    %225 = vst.msk [vmem:[%s224] sm:$0xc] %vm222, %v221
    %s226 = scalar_lea.vmem [#allocation0], 12
    %227 = vst.msk [vmem:[%s226] sm:$0x30] %vm222, %v221
    %s228 = scalar_lea.vmem %s0, 5
    %s229 = smov 3
    %v230 = vld [vmem:[%s228] ss:$16 sm:%s229]
    %s231 = scalar_lea.vmem %s0, 5
    %s232 = smov 12
    %v233 = vld [vmem:[%s231] ss:$16 sm:%s232]
    %vm234 = vcmask 1043458
    %v235 = vsel %vm234, %v233, %v230
    %s236 = scalar_lea.vmem %s0, 5
    %s237 = smov 48
    %v238 = vld [vmem:[%s236] ss:$16 sm:%s237]
    %vm239 = vcmask 1045508
    %v240 = vsel %vm239, %v238, %v235
    %241 = vrot.lane.b32.xlu0 %v240, 20
    %v242 = vpop.permute.xlu0 %241
    %vm243 = vcmask 195744
    %244 = vst.msk [vmem:[#allocation0] sm:$0x3] %vm243, %v242
    %s245 = scalar_lea.vmem [#allocation0], 6
    %246 = vst.msk [vmem:[%s245] sm:$0xc] %vm243, %v242
    %s247 = scalar_lea.vmem [#allocation0], 12
    %248 = vst.msk [vmem:[%s247] sm:$0x30] %vm243, %v242
    %s249 = scalar_lea.vmem %s0, 4
    %s250 = smov 3
    %v251 = vld [vmem:[%s249] ss:$16 sm:%s250]
    %s252 = scalar_lea.vmem %s0, 4
    %s253 = smov 12
    %v254 = vld [vmem:[%s252] ss:$16 sm:%s253]
    %vm255 = vcmask 1043458
    %v256 = vsel %vm255, %v254, %v251
    %s257 = scalar_lea.vmem %s0, 4
    %s258 = smov 48
    %v259 = vld [vmem:[%s257] ss:$16 sm:%s258]
    %vm260 = vcmask 1045508
    %v261 = vsel %vm260, %v259, %v256
    %262 = vrot.lane.b32.xlu0 %v261, 16
    %v263 = vpop.permute.xlu0 %262
    %vm264 = vcmask 162944
    %265 = vst.msk [vmem:[#allocation0] sm:$0x3] %vm264, %v263
    %s266 = scalar_lea.vmem [#allocation0], 6
    %267 = vst.msk [vmem:[%s266] sm:$0xc] %vm264, %v263
    %s268 = scalar_lea.vmem [#allocation0], 12
    %269 = vst.msk [vmem:[%s268] sm:$0x30] %vm264, %v263
    %s270 = scalar_lea.vmem %s0, 3
    %s271 = smov 3
    %v272 = vld [vmem:[%s270] ss:$16 sm:%s271]
    %s273 = scalar_lea.vmem %s0, 3
    %s274 = smov 12
    %v275 = vld [vmem:[%s273] ss:$16 sm:%s274]
    %vm276 = vcmask 1043458
    %v277 = vsel %vm276, %v275, %v272
    %s278 = scalar_lea.vmem %s0, 3
    %s279 = smov 48
    %v280 = vld [vmem:[%s278] ss:$16 sm:%s279]
    %vm281 = vcmask 1045508
    %v282 = vsel %vm281, %v280, %v277
    %283 = vrot.lane.b32.xlu0 %v282, 12
    %v284 = vpop.permute.xlu0 %283
    %vm285 = vcmask 130144
    %286 = vst.msk [vmem:[#allocation0] sm:$0x3] %vm285, %v284
    %s287 = scalar_lea.vmem [#allocation0], 6
    %288 = vst.msk [vmem:[%s287] sm:$0xc] %vm285, %v284
    %s289 = scalar_lea.vmem [#allocation0], 12
    %290 = vst.msk [vmem:[%s289] sm:$0x30] %vm285, %v284
    %s291 = scalar_lea.vmem %s0, 2
    %s292 = smov 3
    %v293 = vld [vmem:[%s291] ss:$16 sm:%s292]
    %s294 = scalar_lea.vmem %s0, 2
    %s295 = smov 12
    %v296 = vld [vmem:[%s294] ss:$16 sm:%s295]
    %vm297 = vcmask 1043458
    %v298 = vsel %vm297, %v296, %v293
    %s299 = scalar_lea.vmem %s0, 2
    %s300 = smov 48
    %v301 = vld [vmem:[%s299] ss:$16 sm:%s300]
    %vm302 = vcmask 1045508
    %v303 = vsel %vm302, %v301, %v298
    %304 = vrot.lane.b32.xlu0 %v303, 8
    %v305 = vpop.permute.xlu0 %304
    %vm306 = vcmask 97344
    %307 = vst.msk [vmem:[#allocation0] sm:$0x3] %vm306, %v305
    %s308 = scalar_lea.vmem [#allocation0], 6
    %309 = vst.msk [vmem:[%s308] sm:$0xc] %vm306, %v305
    %s310 = scalar_lea.vmem [#allocation0], 12
    %311 = vst.msk [vmem:[%s310] sm:$0x30] %vm306, %v305
    %s312 = scalar_lea.vmem %s0, 1
    %s313 = smov 3
    %v314 = vld [vmem:[%s312] ss:$16 sm:%s313]
    %s315 = scalar_lea.vmem %s0, 1
    %s316 = smov 12
    %v317 = vld [vmem:[%s315] ss:$16 sm:%s316]
    %vm318 = vcmask 1043458
    %v319 = vsel %vm318, %v317, %v314
    %s320 = scalar_lea.vmem %s0, 1
    %s321 = smov 48
    %v322 = vld [vmem:[%s320] ss:$16 sm:%s321]
    %vm323 = vcmask 1045508
    %v324 = vsel %vm323, %v322, %v319
    %325 = vrot.lane.b32.xlu0 %v324, 4
    %v326 = vpop.permute.xlu0 %325
    %vm327 = vcmask 64544
    %328 = vst.msk [vmem:[#allocation0] sm:$0x3] %vm327, %v326
    %s329 = scalar_lea.vmem [#allocation0], 6
    %330 = vst.msk [vmem:[%s329] sm:$0xc] %vm327, %v326
    %s331 = scalar_lea.vmem [#allocation0], 12
    %332 = vst.msk [vmem:[%s331] sm:$0x30] %vm327, %v326
    %s334 = sshll.u32 1, 2
    %s335 = ssub.s32 %s334, 1
    %v337 = vld [vmem:[#allocation0] sm:%s335]
    %s338 = sshll.u32 1, 2
    %s339 = ssub.s32 %s338, 1
    %340 = vst [vmem:[%s1] sm:%s339] %v337
    %s341 = scalar_lea.vmem [#allocation0], 8
    %v342 = vld [vmem:[%s341] sm:%s335]
    %s343 = sshll.u32 1, 2
    %s344 = ssub.s32 %s343, 1
    %s345 = scalar_lea.vmem %s1, 2
    %346 = vst [vmem:[%s345] sm:%s344] %v342
    %s347 = scalar_lea.vmem [#allocation0], 16
    %v348 = vld [vmem:[%s347] sm:%s335]
    %s349 = sshll.u32 1, 2
    %s350 = ssub.s32 %s349, 1
    %s351 = smul.addr 2, 2
    %s352 = scalar_lea.vmem %s1, %s351
    %353 = vst [vmem:[%s352] sm:%s350] %v348

// kernel: fwd.2
$region0: #{fwd.2}
  #allocation0 [shape = 'u32[]', space=smem, size = 0x4, offset = 0x4, fixed_abs, tag = 'smem constant byte address 0x4 - core index']
  #allocation1 [shape = 'u32[144,128]{1,0:T(1,128)}', space=vmem, size = 0x12000, scoped, tag = 'internal scratch']
  %s0 = inlined_call_operand.vmem [shape: f32[2,16,72], index: 0, kind: input, shape index: {}]
  %s1 = inlined_call_operand.vmem [shape: f32[2,3,64], index: 1, kind: input, shape index: {}]
  %s2 = inlined_call_operand.vmem [shape: f32[1,64], index: 2, kind: input, shape index: {}]
  %s3 = inlined_call_operand.vmem [shape: f32[64,4], index: 3, kind: input, shape index: {}]
  %s4 = inlined_call_operand.vmem [shape: f32[4,64], index: 4, kind: input, shape index: {}]
  %s5 = inlined_call_operand.vmem [shape: f32[2,16,64], index: 5, kind: output, shape index: {}]
  %s6 = sld [smem:[#allocation0]]
  $region53: #{fwd.2} parent=0
    _
  %s8 = ssub.s32 1, %s6
  %s9 = scalar_select 0, %s8, %s6
  loop: start=0, step=1, limit=4
  $region2: #{fwd.2} parent=0 // loop_pre_header
    _
  $region3: #{fwd.2} parent=0 // loop_header
    %s11 = sphi 0, %s15
    %p12 = scmp.ge.s32.totalorder %s11, 4
    %s18 = sphi 0, %s30
    %s19 = sphi 0, %s26
    %s20 = sphi 0, %s18
    %s21 = sphi 0, %s19
    %s22 = sphi 0, %s20
    %s23 = sphi 0, %s21
    %s35 = sphi 0, %s37
    %s38 = sphi 0, %s35
    %s39 = sphi 0, %s38
    %s55 = sphi 0, %s39
    %s61 = sphi 0, %s63
    %s64 = sphi 0, %s61
    %s65 = sphi 0, %s64
    %s81 = sphi 0, %s65
    %s85 = sphi 0, %s85
    %s87 = sphi 0, %s85
    %s88 = sphi 0, %s87
    %s102 = sphi 0, %s88
    %s106 = sphi 0, %s106
    %s108 = sphi 0, %s106
    %s109 = sphi 0, %s108
    %s123 = sphi 0, %s109
    %s127 = sphi 0, %s127
    %s129 = sphi 0, %s127
    %s130 = sphi 0, %s129
    %s144 = sphi 0, %s130
    %s152 = sphi 0, %s154
    %s155 = sphi 0, %s152
    %s156 = sphi 0, %s155
    %s172 = sphi 0, %s156
  $region4: #{fwd.2} parent=0 // loop_header_branch
    %14 = sbr.rel (%p12) target = $region8
  $region5: #{fwd.2} parent=0 // loop_body
    %s16 = ssub.s32 %s11, 1
    %s17 = ssub.s32 %s11, 2
    %s24 = sadd.s32 1, %s19
    %p25 = scmp.ge.s32.totalorder %s24, 1
    %s26 = scalar_select %p25, 0, %s24
    %s27 = sadd.s32 1, %s18
    %s28 = scalar_select %p25, %s27, %s18
    %p29 = scmp.ge.s32.totalorder %s28, 2
    %s30 = scalar_select %p29, 0, %s28
    %s31 = ssub.s32 %s18, %s30
    %s32 = ssub.s32 %s19, %s26
    %s33 = sor.u32 %s31, %s32
    %p34 = scmp.eq.s32.totalorder %s33, 0
    %s36 = sadd.s32 %s35, 1
    %s37 = scalar_select %p34, %s35, %s36
    %p40 = pneg %p34
    %p41 = scmp.eq.s32.totalorder %s11, 1
    %p42 = por %p40, %p41
    %p43 = scmp.ne.s32.totalorder %s35, %s38
    %p44 = scmp.eq.s32.totalorder %s11, 0
    %p45 = por %p43, %p44
    %p46 = scmp.ne.s32.totalorder %s35, %s38
    %p47 = scmp.eq.s32.totalorder %s16, 1
    %p48 = por %p46, %p47
    %p49 = scmp.ne.s32.totalorder %s38, %s39
    %p50 = scmp.eq.s32.totalorder %s16, 0
    %p51 = por %p49, %p50
    %p52 = scmp.ne.s32.totalorder %s38, %s39
    %p53 = scmp.eq.s32.totalorder %s17, 1
    %p54 = por %p52, %p53
    %p56 = scmp.ne.s32.totalorder %s39, %s55
    %p57 = scmp.eq.s32.totalorder %s17, 0
    %p58 = por %p56, %p57
    %s59 = ssub.s32 %s18, %s30
    %p60 = scmp.eq.s32.totalorder %s59, 0
    %s62 = sadd.s32 %s61, 1
    %s63 = scalar_select %p60, %s61, %s62
    %p66 = pneg %p60
    %p67 = scmp.eq.s32.totalorder %s11, 1
    %p68 = por %p66, %p67
    %p69 = scmp.ne.s32.totalorder %s61, %s64
    %p70 = scmp.eq.s32.totalorder %s11, 0
    %p71 = por %p69, %p70
    %p72 = scmp.ne.s32.totalorder %s61, %s64
    %p73 = scmp.eq.s32.totalorder %s16, 1
    %p74 = por %p72, %p73
    %p75 = scmp.ne.s32.totalorder %s64, %s65
    %p76 = scmp.eq.s32.totalorder %s16, 0
    %p77 = por %p75, %p76
    %p78 = scmp.ne.s32.totalorder %s64, %s65
    %p79 = scmp.eq.s32.totalorder %s17, 1
    %p80 = por %p78, %p79
    %p82 = scmp.ne.s32.totalorder %s65, %s81
    %p83 = scmp.eq.s32.totalorder %s17, 0
    %p84 = por %p82, %p83
    %s86 = sadd.s32 %s85, 1
    %p89 = scmp.eq.s32.totalorder %s11, 1
    %p90 = scmp.ne.s32.totalorder %s85, %s87
    %p91 = scmp.eq.s32.totalorder %s11, 0
    %p92 = por %p90, %p91
    %p93 = scmp.ne.s32.totalorder %s85, %s87
    %p94 = scmp.eq.s32.totalorder %s16, 1
    %p95 = por %p93, %p94
    %p96 = scmp.ne.s32.totalorder %s87, %s88
    %p97 = scmp.eq.s32.totalorder %s16, 0
    %p98 = por %p96, %p97
    %p99 = scmp.ne.s32.totalorder %s87, %s88
    %p100 = scmp.eq.s32.totalorder %s17, 1
    %p101 = por %p99, %p100
    %p103 = scmp.ne.s32.totalorder %s88, %s102
    %p104 = scmp.eq.s32.totalorder %s17, 0
    %p105 = por %p103, %p104
    %s107 = sadd.s32 %s106, 1
    %p110 = scmp.eq.s32.totalorder %s11, 1
    %p111 = scmp.ne.s32.totalorder %s106, %s108
    %p112 = scmp.eq.s32.totalorder %s11, 0
    %p113 = por %p111, %p112
    %p114 = scmp.ne.s32.totalorder %s106, %s108
    %p115 = scmp.eq.s32.totalorder %s16, 1
    %p116 = por %p114, %p115
    %p117 = scmp.ne.s32.totalorder %s108, %s109
    %p118 = scmp.eq.s32.totalorder %s16, 0
    %p119 = por %p117, %p118
    %p120 = scmp.ne.s32.totalorder %s108, %s109
    %p121 = scmp.eq.s32.totalorder %s17, 1
    %p122 = por %p120, %p121
    %p124 = scmp.ne.s32.totalorder %s109, %s123
    %p125 = scmp.eq.s32.totalorder %s17, 0
    %p126 = por %p124, %p125
    %s128 = sadd.s32 %s127, 1
    %p131 = scmp.eq.s32.totalorder %s11, 1
    %p132 = scmp.ne.s32.totalorder %s127, %s129
    %p133 = scmp.eq.s32.totalorder %s11, 0
    %p134 = por %p132, %p133
    %p135 = scmp.ne.s32.totalorder %s127, %s129
    %p136 = scmp.eq.s32.totalorder %s16, 1
    %p137 = por %p135, %p136
    %p138 = scmp.ne.s32.totalorder %s129, %s130
    %p139 = scmp.eq.s32.totalorder %s16, 0
    %p140 = por %p138, %p139
    %p141 = scmp.ne.s32.totalorder %s129, %s130
    %p142 = scmp.eq.s32.totalorder %s17, 1
    %p143 = por %p141, %p142
    %p145 = scmp.ne.s32.totalorder %s130, %s144
    %p146 = scmp.eq.s32.totalorder %s17, 0
    %p147 = por %p145, %p146
    %s148 = ssub.s32 %s18, %s30
    %s149 = ssub.s32 %s19, %s26
    %s150 = sor.u32 %s148, %s149
    %p151 = scmp.eq.s32.totalorder %s150, 0
    %s153 = sadd.s32 %s152, 1
    %s154 = scalar_select %p151, %s152, %s153
    %p157 = pneg %p151
    %p158 = scmp.eq.s32.totalorder %s11, 1
    %p159 = por %p157, %p158
    %p160 = scmp.ne.s32.totalorder %s152, %s155
    %p161 = scmp.eq.s32.totalorder %s11, 0
    %p162 = por %p160, %p161
    %p163 = scmp.ne.s32.totalorder %s152, %s155
    %p164 = scmp.eq.s32.totalorder %s16, 1
    %p165 = por %p163, %p164
    %p166 = scmp.ne.s32.totalorder %s155, %s156
    %p167 = scmp.eq.s32.totalorder %s16, 0
    %p168 = por %p166, %p167
    %p169 = scmp.ne.s32.totalorder %s155, %s156
    %p170 = scmp.eq.s32.totalorder %s17, 1
    %p171 = por %p169, %p170
    %p173 = scmp.ne.s32.totalorder %s156, %s172
    %p174 = scmp.eq.s32.totalorder %s17, 0
    %p175 = por %p173, %p174
    %p176 = scmp.le.s32.totalorder 1, %s11
    %p177 = scmp.lt.s32.totalorder %s11, 3
    %p178 = pnand %p176, %p177
    %p179 = pneg %p178
    // Predicated region
    $region9: #{fwd.2} parent=5 // pred_check
      _
    $region10: #{fwd.2} parent=5 // pred_check_branch
      %181 = sbr.rel (%p178) target = $region12
    $region11: #{fwd.2} parent=5 // pred_region
      %s182 = ssub.s32 %s11, 1
      // Predicated region
      $region13: #{fwd.2} parent=11 // pred_check
        %p183 = pneg %p98
      $region14: #{fwd.2} parent=11 // pred_check_branch
        %185 = sbr.rel (%p183) target = $region16
      $region15: #{fwd.2} parent=11 // pred_region
        _
      $region16: #{fwd.2} parent=11 // pred_fallthru
        _
      // Predicated region
      $region17: #{fwd.2} parent=11 // pred_check
        %p186 = pneg %p119
      $region18: #{fwd.2} parent=11 // pred_check_branch
        %188 = sbr.rel (%p186) target = $region20
      $region19: #{fwd.2} parent=11 // pred_region
        _
      $region20: #{fwd.2} parent=11 // pred_fallthru
        _
      // Predicated region
      $region21: #{fwd.2} parent=11 // pred_check
        %p189 = pneg %p140
      $region22: #{fwd.2} parent=11 // pred_check_branch
        %191 = sbr.rel (%p189) target = $region24
      $region23: #{fwd.2} parent=11 // pred_region
        _
      $region24: #{fwd.2} parent=11 // pred_fallthru
        _
    $region12: #{fwd.2} parent=5 // pred_fallthru
      _
    %p192 = scmp.lt.s32.totalorder %s11, 2
    // Predicated region
    $region25: #{fwd.2} parent=5 // pred_check
      %p193 = pneg %p192
    $region26: #{fwd.2} parent=5 // pred_check_branch
      %195 = sbr.rel (%p193) target = $region28
    $region27: #{fwd.2} parent=5 // pred_region
      // Predicated region
      $region29: #{fwd.2} parent=27 // pred_check
        %p196 = pneg %p45
      $region30: #{fwd.2} parent=27 // pred_check_branch
        %198 = sbr.rel (%p196) target = $region32
      $region31: #{fwd.2} parent=27 // pred_region
        %s199 = smul.u32 2, %s19
        %p200 = scmp.lt.s32.totalorder %s18, 1
        %s201 = scalar_select %p200, %s18, 1
        %p202 = scmp.lt.s32.totalorder %s199, 1
        %s203 = scalar_select %p202, %s199, 1
        %s204 = smul.addr %s201, 2
        %s205 = sadd.s32 %s203, %s204
        %s206 = smul.addr %s205, 8
        %s207 = scalar_lea.vmem %s0, %s206
        %s208 = smul.u32 2, %s19
      $region32: #{fwd.2} parent=27 // pred_fallthru
        _
      // Predicated region
      $region33: #{fwd.2} parent=27 // pred_check
        %p209 = pneg %p71
      $region34: #{fwd.2} parent=27 // pred_check_branch
        %211 = sbr.rel (%p209) target = $region36
      $region35: #{fwd.2} parent=27 // pred_region
        %p212 = scmp.lt.s32.totalorder %s18, 1
        %s213 = scalar_select %p212, %s18, 1
        %s214 = smul.addr %s213, 4
        %s215 = scalar_lea.vmem %s1, %s214
      $region36: #{fwd.2} parent=27 // pred_fallthru
        _
    $region28: #{fwd.2} parent=5 // pred_fallthru
      _
    %p216 = scmp.le.s32.totalorder 1, %s11
    %p217 = scmp.lt.s32.totalorder %s11, 3
    %p218 = pnand %p216, %p217
    %p219 = pneg %p218
    // Predicated region
    $region37: #{fwd.2} parent=5 // pred_check
      _
    $region38: #{fwd.2} parent=5 // pred_check_branch
      %221 = sbr.rel (%p218) target = $region40
    $region39: #{fwd.2} parent=5 // pred_region
      %s222 = ssub.s32 %s11, 1
      %s223 = smul.u32 2, %s21
      %p224 = scmp.lt.s32.totalorder %s20, 1
      %s225 = scalar_select %p224, %s20, 1
      %p226 = scmp.lt.s32.totalorder %s223, 1
      %s227 = scalar_select %p226, %s223, 1
      %s228 = smul.addr %s225, 2
      %s229 = sadd.s32 %s227, %s228
      %s230 = smul.addr %s229, 8
      %s231 = scalar_lea.vmem %s0, %s230
      %p232 = pneg %p51
      %p233 = pneg %p48
      %p234 = scmp.lt.s32.totalorder %s20, 1
      %s235 = scalar_select %p234, %s20, 1
      %s236 = smul.addr %s235, 4
      %s237 = scalar_lea.vmem %s1, %s236
      %p238 = pneg %p77
      %p239 = pneg %p74
      %p240 = pneg %p98
      %p241 = pneg %p95
      %p242 = pneg %p119
      %p243 = pneg %p116
      %p244 = pneg %p140
      %p245 = pneg %p137
      %p246 = pneg %p168
      %p247 = pneg %p165
      %s248 = smul.u32 2, %s21
      %p249 = scmp.lt.s32.totalorder %s20, 1
      %s250 = scalar_select %p249, %s20, 1
      %p251 = scmp.lt.s32.totalorder %s248, 1
      %s252 = scalar_select %p251, %s248, 1
      %s253 = smul.addr %s250, 2
      %s254 = sadd.s32 %s252, %s253
      %s255 = smul.addr %s254, 8
      %s256 = scalar_lea.vmem %s5, %s255
      %s257 = smul.u32 2, %s21
      %p258 = scmp.lt.s32.totalorder %s20, 1
      %s259 = scalar_select %p258, %s20, 1
      %p260 = scmp.lt.s32.totalorder %s257, 1
      %s261 = scalar_select %p260, %s257, 1
      %s262 = smul.addr %s259, 2
      %s263 = sadd.s32 %s261, %s262
      %s264 = smul.addr %s263, 8
      %s265 = scalar_lea.vmem %s0, %s264
      %s266 = smul.u32 2, %s21
      %p267 = scmp.lt.s32.totalorder %s20, 1
      %s268 = scalar_select %p267, %s20, 1
      %s269 = smul.addr %s268, 4
      %s270 = scalar_lea.vmem %s1, %s269
      %s271 = smul.u32 2, %s21
      %p272 = scmp.lt.s32.totalorder %s20, 1
      %s273 = scalar_select %p272, %s20, 1
      %p274 = scmp.lt.s32.totalorder %s271, 1
      %s275 = scalar_select %p274, %s271, 1
      %s276 = smul.addr %s273, 2
      %s277 = sadd.s32 %s275, %s276
      %s278 = smul.addr %s277, 8
      %s279 = scalar_lea.vmem %s5, %s278
      %s280 = smul.u32 2, %s21
      %v281 = vld [vmem:[%s265] sm:$0xff]
      %v282 = vld [vmem:[%s265 + $0x8] sm:$0xff]
      %v283 = vld [vmem:[%s270] sm:$0x7]
      %v284 = vlaneseq
      %v285 = vshrl.u32 %v284, 7
      %v286 = vsub.s32 0, %v285
      %v287 = vrot.slane %v283, %v286
      %v288 = vmul.f32 %v281, %v287
      %v289 = vmul.f32 %v282, %v287
      %v290 = vlaneseq
      %v291 = vshrl.u32 %v290, 7
      %v292 = vsub.s32 1, %v291
      %v293 = vrot.slane %v283, %v292
      %295 = vrot.lane.b32.xlu0 %v293, 4
      %v296 = vpop.permute.xlu0 %295
      %v298 = vmul.f32 %v281, %v296
      %v299 = vmul.f32 %v282, %v296
      %302 = vrot.lane.b32.xlu0 %v298, 124
      %v303 = vpop.permute.xlu0 %302
      %304 = vrot.lane.b32.xlu0 %v299, 124
      %v305 = vpop.permute.xlu0 %304
      %v308 = vadd.f32 %v288, %v303
      %v309 = vadd.f32 %v289, %v305
      %v310 = vlaneseq
      %v311 = vshrl.u32 %v310, 7
      %v312 = vsub.s32 2, %v311
      %v313 = vrot.slane %v283, %v312
      %315 = vrot.lane.b32.xlu0 %v313, 8
      %v316 = vpop.permute.xlu0 %315
      %v318 = vmul.f32 %v281, %v316
      %v319 = vmul.f32 %v282, %v316
      %322 = vrot.lane.b32.xlu0 %v318, 120
      %v323 = vpop.permute.xlu0 %322
      %324 = vrot.lane.b32.xlu0 %v319, 120
      %v325 = vpop.permute.xlu0 %324
      %v328 = vadd.f32 %v308, %v323
      %v329 = vadd.f32 %v309, %v325
      %v330 = vld [vmem:[%s3] sm:$0xff]
      %v331 = vld [vmem:[%s3 + $0x8] sm:$0xff]
      %v332 = vld [vmem:[%s3 + $0x10] sm:$0xff]
      %v333 = vld [vmem:[%s3 + $0x18] sm:$0xff]
      %v334 = vld [vmem:[%s3 + $0x20] sm:$0xff]
      %v335 = vld [vmem:[%s3 + $0x28] sm:$0xff]
      %v336 = vld [vmem:[%s3 + $0x30] sm:$0xff]
      %v337 = vld [vmem:[%s3 + $0x38] sm:$0xff]
      %340 = vrot.lane.b32.xlu0 %v281, 124
      %v341 = vpop.permute.xlu0 %340
      %342 = vrot.lane.b32.xlu0 %v282, 124
      %v343 = vpop.permute.xlu0 %342
      %vm344 = vcmask 523264
      %v345 = vsel %vm344, %v341, 0
      %v347 = vsel %vm344, %v343, 0
      %349 = vmatprep.subr.mxu0 0.0
      %350 = vmatpush1.msra.mxu0 0.0
      %351 = vmatprep.subr.mxu0 0.0
      %352 = vmatpush1.msra.mxu0 0.0
      %353 = vmatprep.subr.mxu0 0.0
      %354 = vmatpush1.msra.mxu0 0.0
      %355 = vmatprep.subr.mxu0 0.0
      %356 = vmatpush1.msra.mxu0 0.0
      %357 = vmatprep.subr.mxu0 0.0
      %358 = vmatpush1.msra.mxu0 0.0
      %359 = vmatprep.subr.mxu0 0.0
      %360 = vmatpush1.msra.mxu0 0.0
      %361 = vmatprep.subr.mxu0 0.0
      %362 = vmatpush1.msra.mxu0 0.0
      %363 = vmatprep.subr.mxu0 0.0
      %364 = vmatpush1.msra.mxu0 0.0
      %365 = vmatprep.subr.mxu0 0.0
      %366 = vmatpush1.msra.mxu0 %v337
      %367 = vmatprep.subr.mxu0 0.0
      %368 = vmatpush1.msra.mxu0 %v336
      %369 = vmatprep.subr.mxu0 0.0
      %370 = vmatpush1.msra.mxu0 %v335
      %371 = vmatprep.subr.mxu0 0.0
      %372 = vmatpush1.msra.mxu0 %v334
      %373 = vmatprep.subr.mxu0 0.0
      %374 = vmatpush1.msra.mxu0 %v333
      %375 = vmatprep.subr.mxu0 0.0
      %376 = vmatpush1.msra.mxu0 %v332
      %377 = vmatprep.subr.mxu0 0.0
      %378 = vmatpush1.msra.mxu0 %v331
      %379 = vmatprep.subr.mxu0 0.0
      %380 = vmatpush1.msra.mxu0 %v330
      %381 = vmatprep.subr.mxu0 0.0
      %382 = vmatpush2.msra.mxu0 0.0
      %383 = vmatprep.subr.mxu0 0.0
      %384 = vmatpush2.msra.mxu0 0.0
      %385 = vmatprep.subr.mxu0 0.0
      %386 = vmatpush2.msra.mxu0 0.0
      %387 = vmatprep.subr.mxu0 0.0
      %388 = vmatpush2.msra.mxu0 0.0
      %389 = vmatprep.subr.mxu0 0.0
      %390 = vmatpush2.msra.mxu0 0.0
      %391 = vmatprep.subr.mxu0 0.0
      %392 = vmatpush2.msra.mxu0 0.0
      %393 = vmatprep.subr.mxu0 0.0
      %394 = vmatpush2.msra.mxu0 0.0
      %395 = vmatprep.subr.mxu0 0.0
      %396 = vmatpush2.msra.mxu0 0.0
      %397 = vmatprep.subr.mxu0 0.0
      %398 = vmatpush2.msra.mxu0 0.0
      %399 = vmatprep.subr.mxu0 0.0
      %400 = vmatpush2.msra.mxu0 0.0
      %401 = vmatprep.subr.mxu0 0.0
      %402 = vmatpush2.msra.mxu0 0.0
      %403 = vmatprep.subr.mxu0 0.0
      %404 = vmatpush2.msra.mxu0 0.0
      %405 = vmatprep.subr.mxu0 0.0
      %406 = vmatpush2.msra.mxu0 0.0
      %407 = vmatprep.subr.mxu0 0.0
      %408 = vmatpush2.msra.mxu0 0.0
      %409 = vmatprep.subr.mxu0 0.0
      %410 = vmatpush2.msra.mxu0 0.0
      %411 = vmatprep.subr.mxu0 0.0
      %412 = vmatpush2.msra.mxu0 0.0
      %413 = vmatprep.mubr.f32.mxu0 0.0
      %414 = vmatmul.mubr.f32.gmra.mxu0 %v345
      %v415 = vpop.f32.mrf.mxu0
      %v416 = vadd.f32 0.0, %v415
      %v417 = vpop.f32.mrf.mxu0
      %418 = vmatprep.mubr.f32.mxu0 0.0
      %419 = vmatmul.mubr.f32.gmra.mxu0 %v347
      %v420 = vpop.f32.mrf.mxu0
      %v421 = vadd.f32 0.0, %v420
      %v422 = vpop.f32.mrf.mxu0
      %423 = vdwg.mxu0
      %v424 = vld [vmem:[%s4] sm:$0xf]
      %vm425 = vcmask 31744
      %v427 = vsel %vm425, %v416, 0
      %v430 = vsel %vm425, %v421, 0
      %vm432 = vcmask 1043456
      %v434 = vsel %vm432, %v424, 0
      %436 = vmatprep.subr.mxu0 0.0
      %437 = vmatpush1.msra.mxu0 0.0
      %438 = vmatprep.subr.mxu0 0.0
      %439 = vmatpush1.msra.mxu0 0.0
      %440 = vmatprep.subr.mxu0 0.0
      %441 = vmatpush1.msra.mxu0 0.0
      %442 = vmatprep.subr.mxu0 0.0
      %443 = vmatpush1.msra.mxu0 0.0
      %444 = vmatprep.subr.mxu0 0.0
      %445 = vmatpush1.msra.mxu0 0.0
      %446 = vmatprep.subr.mxu0 0.0
      %447 = vmatpush1.msra.mxu0 0.0
      %448 = vmatprep.subr.mxu0 0.0
      %449 = vmatpush1.msra.mxu0 0.0
      %450 = vmatprep.subr.mxu0 0.0
      %451 = vmatpush1.msra.mxu0 0.0
      %452 = vmatprep.subr.mxu0 0.0
      %453 = vmatpush1.msra.mxu0 0.0
      %454 = vmatprep.subr.mxu0 0.0
      %455 = vmatpush1.msra.mxu0 0.0
      %456 = vmatprep.subr.mxu0 0.0
      %457 = vmatpush1.msra.mxu0 0.0
      %458 = vmatprep.subr.mxu0 0.0
      %459 = vmatpush1.msra.mxu0 0.0
      %460 = vmatprep.subr.mxu0 0.0
      %461 = vmatpush1.msra.mxu0 0.0
      %462 = vmatprep.subr.mxu0 0.0
      %463 = vmatpush1.msra.mxu0 0.0
      %464 = vmatprep.subr.mxu0 0.0
      %465 = vmatpush1.msra.mxu0 0.0
      %466 = vmatprep.subr.mxu0 0.0
      %467 = vmatpush1.msra.mxu0 %v434
      %468 = vmatprep.subr.mxu0 0.0
      %469 = vmatpush2.msra.mxu0 0.0
      %470 = vmatprep.subr.mxu0 0.0
      %471 = vmatpush2.msra.mxu0 0.0
      %472 = vmatprep.subr.mxu0 0.0
      %473 = vmatpush2.msra.mxu0 0.0
      %474 = vmatprep.subr.mxu0 0.0
      %475 = vmatpush2.msra.mxu0 0.0
      %476 = vmatprep.subr.mxu0 0.0
      %477 = vmatpush2.msra.mxu0 0.0
      %478 = vmatprep.subr.mxu0 0.0
      %479 = vmatpush2.msra.mxu0 0.0
      %480 = vmatprep.subr.mxu0 0.0
      %481 = vmatpush2.msra.mxu0 0.0
      %482 = vmatprep.subr.mxu0 0.0
      %483 = vmatpush2.msra.mxu0 0.0
      %484 = vmatprep.subr.mxu0 0.0
      %485 = vmatpush2.msra.mxu0 0.0
      %486 = vmatprep.subr.mxu0 0.0
      %487 = vmatpush2.msra.mxu0 0.0
      %488 = vmatprep.subr.mxu0 0.0
      %489 = vmatpush2.msra.mxu0 0.0
      %490 = vmatprep.subr.mxu0 0.0
      %491 = vmatpush2.msra.mxu0 0.0
      %492 = vmatprep.subr.mxu0 0.0
      %493 = vmatpush2.msra.mxu0 0.0
      %494 = vmatprep.subr.mxu0 0.0
      %495 = vmatpush2.msra.mxu0 0.0
      %496 = vmatprep.subr.mxu0 0.0
      %497 = vmatpush2.msra.mxu0 0.0
      %498 = vmatprep.subr.mxu0 0.0
      %499 = vmatpush2.msra.mxu0 0.0
      %500 = vmatprep.mubr.f32.mxu0 0.0
      %501 = vmatmul.mubr.f32.gmra.mxu0 %v427
      %v502 = vpop.f32.mrf.mxu0
      %v503 = vadd.f32 0.0, %v502
      %v504 = vpop.f32.mrf.mxu0
      %505 = vmatprep.mubr.f32.mxu0 0.0
      %506 = vmatmul.mubr.f32.gmra.mxu0 %v430
      %v507 = vpop.f32.mrf.mxu0
      %v508 = vadd.f32 0.0, %v507
      %v509 = vpop.f32.mrf.mxu0
      %510 = vdwg.mxu0
      %v511 = vsub.f32 %v328, %v503
      %v512 = vsub.f32 %v329, %v508
      %v513 = vld [vmem:[%s2] sm:$0x1]
      %v515 = vlaneseq
      %v516 = vshrl.u32 %v515, 7
      %v517 = vsub.s32 0, %v516
      %v518 = vrot.slane %v513, %v517
      %519 = vrot.lane.b32.xlu0 %v518, 4
      %v520 = vpop.permute.xlu0 %519
      %v522 = vmul.f32 %v281, %v520
      %v523 = vmul.f32 %v282, %v520
      %526 = vrot.lane.b32.xlu0 %v522, 124
      %v527 = vpop.permute.xlu0 %526
      %528 = vrot.lane.b32.xlu0 %v523, 124
      %v529 = vpop.permute.xlu0 %528
      %v532 = vadd.f32 %v511, %v527
      %v533 = vadd.f32 %v512, %v529
      %534 = vst.msk [vmem:[%s279] sm:$0xff] %vm344, %v532
      %535 = vst.msk [vmem:[%s279 + $0x8] sm:$0xff] %vm344, %v533
      %s536 = smul.u32 2, %s21
      %p537 = scmp.lt.s32.totalorder %s20, 1
      %s538 = scalar_select %p537, %s20, 1
      %p539 = scmp.lt.s32.totalorder %s536, 1
      %s540 = scalar_select %p539, %s536, 1
      %s541 = smul.addr %s538, 2
      %s542 = sadd.s32 %s540, %s541
      %s543 = smul.addr %s542, 8
      %s544 = scalar_lea.vmem %s5, %s543
      // Predicated region
      $region41: #{fwd.2} parent=39 // pred_check
        %p545 = pneg %p165
      $region42: #{fwd.2} parent=39 // pred_check_branch
        %547 = sbr.rel (%p545) target = $region44
      $region43: #{fwd.2} parent=39 // pred_region
        %s548 = smul.u32 2, %s21
      $region44: #{fwd.2} parent=39 // pred_fallthru
        _
    $region40: #{fwd.2} parent=5 // pred_fallthru
      _
    %p549 = scmp.le.s32.totalorder 2, %s11
    // Predicated region
    $region45: #{fwd.2} parent=5 // pred_check
      %p550 = pneg %p549
    $region46: #{fwd.2} parent=5 // pred_check_branch
      %552 = sbr.rel (%p550) target = $region48
    $region47: #{fwd.2} parent=5 // pred_region
      %s553 = ssub.s32 %s11, 2
      // Predicated region
      $region49: #{fwd.2} parent=47 // pred_check
        %p554 = pneg %p171
      $region50: #{fwd.2} parent=47 // pred_check_branch
        %556 = sbr.rel (%p554) target = $region52
      $region51: #{fwd.2} parent=47 // pred_region
        %s557 = smul.u32 2, %s23
        %p558 = scmp.lt.s32.totalorder %s22, 1
        %s559 = scalar_select %p558, %s22, 1
        %p560 = scmp.lt.s32.totalorder %s557, 1
        %s561 = scalar_select %p560, %s557, 1
        %s562 = smul.addr %s559, 2
        %s563 = sadd.s32 %s561, %s562
        %s564 = smul.addr %s563, 8
        %s565 = scalar_lea.vmem %s5, %s564
      $region52: #{fwd.2} parent=47 // pred_fallthru
        _
    $region48: #{fwd.2} parent=5 // pred_fallthru
      _
  $region6: #{fwd.2} parent=0 // loop_footer
    %s15 = sadd.s32 1, %s11
  $region7: #{fwd.2} parent=0 // loop_footer_branch
    %10 = sbr.rel target = $region3
  $region8: #{fwd.2} parent=0 // loop_exit
    _

</llo_original>
